<compile_context>
chip_gen: v7x
topology: tpu7x:2x2x1
jax: 0.10.0
libtpu: 0.0.40
codegen_flags: <defaults>
</compile_context>

<pallas_src>
import functools

import jax
import jax.numpy as jnp
from jax import lax
from jax.experimental import pallas as pl
from jax.experimental.pallas import tpu as pltpu


# ------------------------------ helpers ------------------------------------ #

def _pick_tile(dim, targets):
    """Largest target that evenly divides dim, else the full dim (legal block)."""
    for t in targets:
        if dim >= t and dim % t == 0:
            return t
    # TODO(synk): dims with no nice divisor fall back to a single full-dim
    # block; very long non-divisible sequences should be padded by the caller.
    return dim


def _vmem_budget_bytes():
    """Generation-aware scoped-VMEM budget (v7x: 64 MiB phys, v5e/v6e: 128 MiB)."""
    cap = None
    try:
        cap = getattr(pltpu.get_tpu_info(), "vmem_capacity_bytes", None)
    except Exception:
        cap = None
    if not cap:
        cap = 64 * 1024 * 1024  # conservative fallback (v7x-sized)
    return int(min(cap * 3 // 4, 96 * 1024 * 1024))


def _attn_tiles(Sq, Sk, HDk, HDv, h, d_k, d_v, itemsize, mask_itemsize, budget, B):
    """Largest (tq, tk) whose double-buffered working set fits the VMEM budget."""
    q_opts = [t for t in (1024, 512, 256, 128) if t <= Sq and Sq % t == 0] or [Sq]
    k_opts = [t for t in (512, 256, 128) if t <= Sk and Sk % t == 0] or [Sk]

    def vmem_est(tq, tk):
        io = 2 * itemsize * (tq * HDk + tk * HDk + tk * HDv + tq * HDv)
        io += 2 * mask_itemsize * tq * tk
        scratch = itemsize * h * tq * d_k + 4 * h * tq * (2 + d_v)
        return io + scratch

    for tq in q_opts:
        # Keep >= 2 parallel grid steps so multi-TensorCore chips stay busy.
        if B * (Sq // tq) < 2 and tq != q_opts[-1]:
            continue
        for tk in k_opts:
            if vmem_est(tq, tk) <= budget:
                return tq, tk
    return q_opts[-1], k_opts[-1]


# ------------------------------ kernels ------------------------------------ #

def _linear_kernel(x_ref, w_ref, b_ref, o_ref, acc_ref):
    """Tiled y = x @ w + b with an f32 accumulator over the K grid axis."""
    k = pl.program_id(2)

    @pl.when(k == 0)
    def _():
        acc_ref[...] = jnp.zeros_like(acc_ref)

    acc_ref[...] += jnp.dot(x_ref[...], w_ref[...],
                            preferred_element_type=jnp.float32)

    @pl.when(k == pl.num_programs(2) - 1)
    def _():
        o_ref[...] = (acc_ref[...]
                      + b_ref[...].astype(jnp.float32)).astype(o_ref.dtype)


def _flash_attn_kernel(*refs, scale, h, d_k, d_v, has_mask, causal, tq, tk):
    """Head-packed flash attention for one (batch, q_tile, kv_tile) block.

    q: (tq, h*d_k), k: (tk, h*d_k), v: (tk, h*d_v), optional mask: (tq, tk).
    Scratch: qc (h,tq,d_k) cached Q, m/l (h,tq,1), acc (h,tq,d_v) all f32.
    """
    if has_mask:
        q_ref, k_ref, v_ref, mask_ref, o_ref, qc_ref, m_ref, l_ref, acc_ref = refs
    else:
        q_ref, k_ref, v_ref, o_ref, qc_ref, m_ref, l_ref, acc_ref = refs
        mask_ref = None

    qi = pl.program_id(1)
    kv = pl.program_id(2)

    @pl.when(kv == 0)
    def _init():
        m_ref[...] = jnp.full_like(m_ref, -jnp.inf)
        l_ref[...] = jnp.zeros_like(l_ref)
        acc_ref[...] = jnp.zeros_like(acc_ref)
        # Cache per-head Q slices once per q tile; later reads are tile-aligned
        # leading-axis indexes instead of per-kv-step lane slices.
        for head in range(h):
            qc_ref[head] = q_ref[:, head * d_k:(head + 1) * d_k]

    def _compute():
        if has_mask:
            keep = mask_ref[...] != 0                      # torch masked_fill(mask==0)
        elif causal:
            row = qi * tq + lax.broadcasted_iota(jnp.int32, (tq, tk), 0)
            col = kv * tk + lax.broadcasted_iota(jnp.int32, (tq, tk), 1)
            keep = row >= col
        else:
            keep = None

        for head in range(h):
            q = qc_ref[head]                               # (tq, d_k) native dtype
            k = k_ref[:, head * d_k:(head + 1) * d_k]      # (tk, d_k)
            v = v_ref[:, head * d_v:(head + 1) * d_v]      # (tk, d_v)

            # Scores: contract last axes (no explicit K transpose), f32 accumulate.
            s = lax.dot_general(q, k, (((1,), (1,)), ((), ())),
                                preferred_element_type=jnp.float32) * scale
            if keep is not None:
                s = jnp.where(keep, s, -1e9)               # masked_fill semantics

            m_prev = m_ref[head]                           # (tq, 1)
            l_prev = l_ref[head]
            m_new = jnp.maximum(m_prev, jnp.max(s, axis=-1, keepdims=True))
            alpha = jnp.exp(m_prev - m_new)
            p = jnp.exp(s - m_new)                         # (tq, tk) f32

            l_ref[head] = alpha * l_prev + jnp.sum(p, axis=-1, keepdims=True)
            m_ref[head] = m_new

            pv = lax.dot_general(p.astype(v.dtype), v, (((1,), (0,)), ((), ())),
                                 preferred_element_type=jnp.float32)
            acc_ref[head] = alpha * acc_ref[head] + pv

    if causal:
        # Skip kv tiles entirely above the diagonal (their DMA is also elided
        # by the clamped K/V index_maps in the wrapper).
        pl.when(kv * tk < (qi + 1) * tq)(_compute)
    else:
        _compute()

    @pl.when(kv == pl.num_programs(2) - 1)
    def _finalize():
        parts = []
        for head in range(h):
            inv = pl.reciprocal(l_ref[head], approx=False)   # exact; runs once/tile
            parts.append(acc_ref[head] * inv)
        # Single lane-dense store of the head-packed output tile.
        o_ref[...] = jnp.concatenate(parts, axis=-1).astype(o_ref.dtype)


# ------------------------------ wrappers ------------------------------------ #

def pallas_linear(x2d, w, b):
    """y = x2d @ w + b with a tiled (M//tm, N//tn, K//tk) accumulator grid."""
    M, K = x2d.shape
    N = w.shape[1]
    tm = _pick_tile(M, (512, 256, 128))
    tn = _pick_tile(N, (512, 256, 128))
    tk = _pick_tile(K, (1024, 512, 256, 128))
    grid = (M // tm, N // tn, K // tk)

    return pl.pallas_call(
        _linear_kernel,
        out_shape=jax.ShapeDtypeStruct((M, N), x2d.dtype),
        grid_spec=pltpu.PrefetchScalarGridSpec(
            num_scalar_prefetch=0,
            grid=grid,
            in_specs=[
                pl.BlockSpec((tm, tk), lambda i, j, k: (i, k)),
                pl.BlockSpec((tk, tn), lambda i, j, k: (k, j)),
                pl.BlockSpec((1, tn), lambda i, j, k: (0, j)),
            ],
            out_specs=pl.BlockSpec((tm, tn), lambda i, j, k: (i, j)),
            scratch_shapes=[pltpu.VMEM((tm, tn), jnp.float32)],
        ),
        compiler_params=pltpu.CompilerParams(
            dimension_semantics=("parallel", "parallel", "arbitrary"),
            vmem_limit_bytes=_vmem_budget_bytes(),
        ),
    )(x2d, w, b.reshape(1, N))


def pallas_attention(Q, K, V, mask=None, *, h, d_k, d_v, causal=False,
                     q_block=0, k_block=0, v_block=0, tq=None, tk=None):
    """Head-packed flash attention.

    Q/K/V may be three distinct (B, S, h*d) arrays, or the SAME packed
    (B, S, 3*h*d) array with q_block/k_block/v_block selecting the last-axis
    block (avoids HBM slicing after a fused QKV projection).
    `mask` is passed in its native (bool/int) dtype and applied in-kernel;
    `causal=True` needs no mask tensor at all and skips above-diagonal tiles.
    """
    assert not (causal and mask is not None)
    B, Sq = Q.shape[0], Q.shape[1]
    Sk = K.shape[1]
    HDk, HDv = h * d_k, h * d_v

    itemsize = jnp.dtype(Q.dtype).itemsize
    mask_itemsize = jnp.dtype(mask.dtype).itemsize if mask is not None else 0
    budget = _vmem_budget_bytes()
    auto_tq, auto_tk = _attn_tiles(Sq, Sk, HDk, HDv, h, d_k, d_v,
                                   itemsize, mask_itemsize, budget, B)
    tq = auto_tq if tq is None else tq
    tk = auto_tk if tk is None else tk
    assert Sq % tq == 0 and Sk % tk == 0

    grid = (B, Sq // tq, Sk // tk)
    scale = 1.0 / float(d_k) ** 0.5
    has_mask = mask is not None

    if causal:
        def kv_seq_idx(qi, ki):
            # Clamp to the last tile intersecting the causal band so the
            # pipeline reuses the previous block (no DMA) for skipped tiles.
            return jnp.minimum(ki, ((qi + 1) * tq - 1) // tk)
    else:
        def kv_seq_idx(qi, ki):
            return ki

    in_specs = [
        pl.BlockSpec((None, tq, HDk), lambda b, qi, ki: (b, qi, q_block)),
        pl.BlockSpec((None, tk, HDk),
                     lambda b, qi, ki: (b, kv_seq_idx(qi, ki), k_block)),
        pl.BlockSpec((None, tk, HDv),
                     lambda b, qi, ki: (b, kv_seq_idx(qi, ki), v_block)),
    ]
    inputs = [Q, K, V]
    if has_mask:
        in_specs.append(pl.BlockSpec((None, tq, tk),
                                     lambda b, qi, ki: (b, qi, ki)))
        inputs.append(mask)

    kern = functools.partial(_flash_attn_kernel, scale=scale, h=h, d_k=d_k,
                             d_v=d_v, has_mask=has_mask, causal=causal,
                             tq=tq, tk=tk)

    return pl.pallas_call(
        kern,
        out_shape=jax.ShapeDtypeStruct((B, Sq, HDv), Q.dtype),
        grid_spec=pltpu.PrefetchScalarGridSpec(
            num_scalar_prefetch=0,
            grid=grid,
            in_specs=in_specs,
            out_specs=pl.BlockSpec((None, tq, HDv), lambda b, qi, ki: (b, qi, 0)),
            scratch_shapes=[
                pltpu.VMEM((h, tq, d_k), Q.dtype),       # cached per-head Q
                pltpu.VMEM((h, tq, 1), jnp.float32),     # running max  m
                pltpu.VMEM((h, tq, 1), jnp.float32),     # running sum  l
                pltpu.VMEM((h, tq, d_v), jnp.float32),   # output accumulator
            ],
        ),
        compiler_params=pltpu.CompilerParams(
            dimension_semantics=("parallel", "parallel", "arbitrary"),
            vmem_limit_bytes=budget,
        ),
    )(*inputs)


def multi_head_attention(params, query, key, value, mask=None, *, h, d_k, d_v,
                         causal=False, tq=None, tk=None):
    """Forward pass equivalent to the PyTorch MultiHeadAttention module."""
    B, Sq, dm = query.shape
    Sk = key.shape[1]
    HDk, HDv = h * d_k, h * d_v

    # Fused path only triggers when query/key/value are the same array object
    # (same object the torch module would see for self-attention).
    self_attn = (query is key) and (key is value)
    fuse_packed = self_attn and d_k == d_v and HDk % 128 == 0

    if fuse_packed:
        # One wide QKV matmul; the packed result feeds attention directly via
        # last-axis block offsets -- no Q/K/V slices materialized in HBM.
        w = jnp.concatenate([params["wq"], params["wk"], params["wv"]], axis=1)
        b = jnp.concatenate([params["bq"], params["bk"], params["bv"]])
        qkv = pallas_linear(query.reshape(B * Sq, dm), w, b).reshape(B, Sq, 3 * HDk)
        out = pallas_attention(qkv, qkv, qkv, mask, h=h, d_k=d_k, d_v=d_v,
                               causal=causal, q_block=0, k_block=1, v_block=2,
                               tq=tq, tk=tk)
    else:
        Q = pallas_linear(query.reshape(B * Sq, dm), params["wq"],
                          params["bq"]).reshape(B, Sq, HDk)
        K = pallas_linear(key.reshape(B * Sk, dm), params["wk"],
                          params["bk"]).reshape(B, Sk, HDk)
        V = pallas_linear(value.reshape(B * Sk, dm), params["wv"],
                          params["bv"]).reshape(B, Sk, HDv)
        out = pallas_attention(Q, K, V, mask, h=h, d_k=d_k, d_v=d_v,
                               causal=causal, tq=tq, tk=tk)

    out = pallas_linear(out.reshape(B * Sq, HDv), params["wo"], params["bo"])
    return out.reshape(B, Sq, dm)


# ------------------------------ reference ----------------------------------- #

def multi_head_attention_ref(params, query, key, value, mask=None, *, h, d_k, d_v):
    B, Sq, dm = query.shape
    Sk = key.shape[1]
    Q = (query.reshape(B * Sq, dm) @ params["wq"] + params["bq"]).reshape(B, Sq, h, d_k).transpose(0, 2, 1, 3)
    K = (key.reshape(B * Sk, dm) @ params["wk"] + params["bk"]).reshape(B, Sk, h, d_k).transpose(0, 2, 1, 3)
    V = (value.reshape(B * Sk, dm) @ params["wv"] + params["bv"]).reshape(B, Sk, h, d_v).transpose(0, 2, 1, 3)
    s = jnp.einsum("bhqd,bhkd->bhqk", Q, K) / d_k ** 0.5
    if mask is not None:
        s = jnp.where(mask[:, None, :, :] == 0, -1e9, s)
    p = jax.nn.softmax(s, axis=-1)
    o = jnp.einsum("bhqk,bhkd->bhqd", p, V)
    o = o.transpose(0, 2, 1, 3).reshape(B * Sq, h * d_v)
    return (o @ params["wo"] + params["bo"]).reshape(B, Sq, dm)


# -------------------------------- main --------------------------------------- #

if __name__ == "__main__":
    def init_linear(kw, kb, fan_in, fan_out):
        bound = 1.0 / (fan_in ** 0.5)
        w = jax.random.uniform(kw, (fan_in, fan_out), jnp.float32, -bound, bound)
        b = jax.random.uniform(kb, (fan_out,), jnp.float32, -bound, bound)
        return w, b

    def make_params(keys, d_model, d_k, d_v, h):
        wq, bq = init_linear(keys[0], keys[1], d_model, d_k * h)
        wk, bk = init_linear(keys[2], keys[3], d_model, d_k * h)
        wv, bv = init_linear(keys[4], keys[5], d_model, d_v * h)
        wo, bo = init_linear(keys[6], keys[7], d_v * h, d_model)
        return dict(wq=wq, bq=bq, wk=wk, bk=bk, wv=wv, bv=bv, wo=wo, bo=bo)

    # ---------------- small config (spec-sized shapes) ---------------- #
    d_model, d_k, d_v, h = 32, 8, 8, 4
    B, S = 2, 8
    ks = jax.random.split(jax.random.PRNGKey(0), 11)
    params = make_params(ks, d_model, d_k, d_v, h)
    query = jax.random.normal(ks[8], (B, S, d_model), jnp.float32)
    key_in = jax.random.normal(ks[9], (B, S, d_model), jnp.float32)
    value = jax.random.normal(ks[10], (B, S, d_model), jnp.float32)

    # 1) cross-attention, no mask
    out = jax.block_until_ready(
        multi_head_attention(params, query, key_in, value, h=h, d_k=d_k, d_v=d_v))
    ref = multi_head_attention_ref(params, query, key_in, value, h=h, d_k=d_k, d_v=d_v)
    assert out.shape == (B, S, d_model)
    assert jnp.allclose(out, ref, atol=2e-3, rtol=2e-3), "mismatch (no mask)"

    # 2) self-attention with an explicit int mask streamed raw into the kernel
    causal_mask = jnp.broadcast_to(jnp.tril(jnp.ones((S, S), jnp.int32)), (B, S, S))
    out2 = jax.block_until_ready(
        multi_head_attention(params, query, query, query, causal_mask,
                             h=h, d_k=d_k, d_v=d_v))
    ref2 = multi_head_attention_ref(params, query, query, query, causal_mask,
                                    h=h, d_k=d_k, d_v=d_v)
    assert jnp.allclose(out2, ref2, atol=2e-3, rtol=2e-3), "mismatch (explicit mask)"

    # 3) same computation via the in-kernel causal path (no mask tensor at all)
    out3 = jax.block_until_ready(
        multi_head_attention(params, query, query, query, h=h, d_k=d_k, d_v=d_v,
                             causal=True))
    assert jnp.allclose(out3, ref2, atol=2e-3, rtol=2e-3), "mismatch (causal)"

    # ------- moderate config: fused packed QKV + multi-tile causal skip ------- #
    d_model2, d_k2, d_v2, h2 = 256, 32, 32, 8
    B2, S2 = 2, 512
    ks2 = jax.random.split(jax.random.PRNGKey(1), 9)
    params2 = make_params(ks2, d_model2, d_k2, d_v2, h2)
    x2 = jax.random.normal(ks2[8], (B2, S2, d_model2), jnp.float32)
    mask2 = jnp.broadcast_to(jnp.tril(jnp.ones((S2, S2), jnp.int32)), (B2, S2, S2))

    out4 = jax.block_until_ready(
        multi_head_attention(params2, x2, x2, x2, h=h2, d_k=d_k2, d_v=d_v2,
                             causal=True, tq=256, tk=256))
    ref4 = multi_head_attention_ref(params2, x2, x2, x2, mask2,
                                    h=h2, d_k=d_k2, d_v=d_v2)
    assert jnp.allclose(out4, ref4, atol=2e-3, rtol=2e-3), "mismatch (packed causal)"

    # 5) bf16 activations/weights -> bf16 MXU operands, f32 accumulation
    params_bf16 = {k: v.astype(jnp.bfloat16) for k, v in params2.items()}
    x_bf16 = x2.astype(jnp.bfloat16)
    out5 = jax.block_until_ready(
        multi_head_attention(params_bf16, x_bf16, x_bf16, x_bf16,
                             h=h2, d_k=d_k2, d_v=d_v2, causal=True,
                             tq=256, tk=256))
    ref5 = multi_head_attention_ref(params_bf16, x_bf16, x_bf16, x_bf16, mask2,
                                    h=h2, d_k=d_k2, d_v=d_v2)
    assert jnp.allclose(out5.astype(jnp.float32), ref5.astype(jnp.float32),
                        atol=5e-2, rtol=5e-2), "mismatch (bf16)"

    print("KERNEL_OK")
</pallas_src>

<mosaic_0001>
module attributes {stable_mosaic.version = 11 : i64} {
  func.func @_linear_kernel(%arg0: i32, %arg1: i32, %arg2: i32, %arg3: memref<16x32xf32, #tpu.memory_space<vmem>>, %arg4: memref<32x32xf32, #tpu.memory_space<vmem>>, %arg5: memref<1x32xf32, #tpu.memory_space<vmem>>, %arg6: memref<16x32xf32, #tpu.memory_space<vmem>>, %arg7: memref<16x32xf32, #tpu.memory_space<vmem>>) attributes {dimension_semantics = [#tpu.dimension_semantics<parallel>, #tpu.dimension_semantics<parallel>, #tpu.dimension_semantics<arbitrary>], iteration_bounds = array<i64: 1, 1, 1>, scalar_prefetch = 0 : i64, scratch_operands = 1 : i64, tpu.core_type = #tpu.core_type<tc>, window_params = [{transform_indices = @transform_0, window_bounds = array<i64: 16, 32>}, {transform_indices = @transform_1, window_bounds = array<i64: 32, 32>}, {transform_indices = @transform_2, window_bounds = array<i64: 1, 32>}, {transform_indices = @transform_3, window_bounds = array<i64: 16, 32>}]} {
    %c0_i32 = arith.constant 0 : i32
    %0 = arith.cmpi eq, %arg2, %c0_i32 : i32
    %1 = arith.extui %0 : i1 to i32
    %c0_i32_0 = arith.constant 0 : i32
    %2 = arith.cmpi ne, %1, %c0_i32_0 : i32
    scf.if %2 {
      %cst_10 = arith.constant 0.000000e+00 : f32
      %12 = vector.broadcast %cst_10 : f32 to vector<16x32xf32>
      %c0_11 = arith.constant 0 : index
      %c0_12 = arith.constant 0 : index
      %13 = vector.load %arg7[%c0_11, %c0_12] : memref<16x32xf32, #tpu.memory_space<vmem>>, vector<16x32xf32>
      tpu.vector_store %arg7[%c0_11, %c0_12], %12 {strides = array<i32>} : memref<16x32xf32, #tpu.memory_space<vmem>>, vector<16x32xf32>,
    } else {
    }
    %c0 = arith.constant 0 : index
    %c0_1 = arith.constant 0 : index
    %3 = vector.load %arg7[%c0, %c0_1] : memref<16x32xf32, #tpu.memory_space<vmem>>, vector<16x32xf32>
    %c0_2 = arith.constant 0 : index
    %c0_3 = arith.constant 0 : index
    %4 = vector.load %arg3[%c0_2, %c0_3] : memref<16x32xf32, #tpu.memory_space<vmem>>, vector<16x32xf32>
    %c0_4 = arith.constant 0 : index
    %c0_5 = arith.constant 0 : index
    %5 = vector.load %arg4[%c0_4, %c0_5] : memref<32x32xf32, #tpu.memory_space<vmem>>, vector<32x32xf32>
    %cst = arith.constant dense<0.000000e+00> : vector<16x32xf32>
    %6 = tpu.matmul %4, %5, %cst {dimension_numbers = #tpu.dot_dimension_numbers<[1], [0], [0], [1], [0, 0, 1, 1], [], []>} : vector<16x32xf32>, vector<32x32xf32>, vector<16x32xf32> -> vector<16x32xf32>
    %7 = arith.addf %3, %6 : vector<16x32xf32>
    %c0_6 = arith.constant 0 : index
    %c0_7 = arith.constant 0 : index
    %8 = vector.load %arg7[%c0_6, %c0_7] : memref<16x32xf32, #tpu.memory_space<vmem>>, vector<16x32xf32>
    tpu.vector_store %arg7[%c0_6, %c0_7], %7 {strides = array<i32>} : memref<16x32xf32, #tpu.memory_space<vmem>>, vector<16x32xf32>,
    %c0_i32_8 = arith.constant 0 : i32
    %9 = arith.cmpi eq, %arg2, %c0_i32_8 : i32
    %10 = arith.extui %9 : i1 to i32
    %c0_i32_9 = arith.constant 0 : i32
    %11 = arith.cmpi ne, %10, %c0_i32_9 : i32
    scf.if %11 {
      %c0_10 = arith.constant 0 : index
      %c0_11 = arith.constant 0 : index
      %12 = vector.load %arg7[%c0_10, %c0_11] : memref<16x32xf32, #tpu.memory_space<vmem>>, vector<16x32xf32>
      %c0_12 = arith.constant 0 : index
      %c0_13 = arith.constant 0 : index
      %13 = vector.load %arg5[%c0_12, %c0_13] : memref<1x32xf32, #tpu.memory_space<vmem>>, vector<1x32xf32>
      %14 = vector.broadcast %13 : vector<1x32xf32> to vector<16x32xf32>
      %15 = arith.addf %12, %14 : vector<16x32xf32>
      %c0_14 = arith.constant 0 : index
      %c0_15 = arith.constant 0 : index
      %16 = vector.load %arg6[%c0_14, %c0_15] : memref<16x32xf32, #tpu.memory_space<vmem>>, vector<16x32xf32>
      tpu.vector_store %arg6[%c0_14, %c0_15], %15 {strides = array<i32>} : memref<16x32xf32, #tpu.memory_space<vmem>>, vector<16x32xf32>,
    } else {
    }
    return
  }
  func.func @transform_0(%arg0: i32, %arg1: i32, %arg2: i32) -> (i32, i32) {
    %c0_i32 = arith.constant 0 : i32
    return %arg0, %arg2 : i32, i32
  }
  func.func @transform_1(%arg0: i32, %arg1: i32, %arg2: i32) -> (i32, i32) {
    %c0_i32 = arith.constant 0 : i32
    return %arg2, %arg1 : i32, i32
  }
  func.func @transform_2(%arg0: i32, %arg1: i32, %arg2: i32) -> (i32, i32) {
    %c0_i32 = arith.constant 0 : i32
    %c0_i32_0 = arith.constant 0 : i32
    return %c0_i32, %arg1 : i32, i32
  }
  func.func @transform_3(%arg0: i32, %arg1: i32, %arg2: i32) -> (i32, i32) {
    %c0_i32 = arith.constant 0 : i32
    return %arg0, %arg1 : i32, i32
  }
}

</mosaic_0001>

<llo_original>
// kernel: tpu_custom_call.1
$region0: #{tpu_custom_call.1}
  #allocation0 [shape = 'u32[]', space=smem, size = 0x4, offset = 0x4, fixed_abs, tag = 'smem constant byte address 0x4 - core index']
  #allocation1 [shape = 'u32[144,128]{1,0:T(1,128)}', space=vmem, size = 0x12000, scoped, tag = 'internal scratch']
  #allocation2 [shape = 'f32[16,32]{1,0:T(8,128)}', space=vmem, size = 0x2000, scoped, tag = 'scratch operand']
  %s0 = inlined_call_operand.hbm [shape: f32[16,32], index: 0, kind: input, shape index: {}]
  %s1 = inlined_call_operand.hbm [shape: f32[32,32], index: 1, kind: input, shape index: {}]
  %s2 = inlined_call_operand.vmem [shape: f32[1,32], index: 2, kind: input, shape index: {}]
  %s3 = inlined_call_operand.hbm [shape: f32[16,32], index: 3, kind: output, shape index: {}]
  %s4 = sld [smem:[#allocation0]]
  $region38: #{tpu_custom_call.1} parent=0
    _
  %s6 = ssub.s32 1, %s4
  %s7 = scalar_select 0, %s6, %s4
  $region1: #{tpu_custom_call.1} parent=0
    #allocation3 [shape = 'u8[8192]{0}', space=vmem, size = 0x2000, scoped, tag = 'input window, operand 0, single buffered']
    #allocation4 [shape = 's32[1]{0}', space=sflag, size = 0x4, scoped, tag = 'scoped memory for tpu_custom_call.1']
    #allocation5 [shape = 's32[1]{0}', space=sflag, size = 0x4, scoped, tag = 'scoped memory for tpu_custom_call.1']
    #allocation6 [shape = 'u8[16384]{0}', space=vmem, size = 0x4000, scoped, tag = 'input window, operand 1, single buffered']
    #allocation7 [shape = 's32[1]{0}', space=sflag, size = 0x4, scoped, tag = 'scoped memory for tpu_custom_call.1']
    #allocation8 [shape = 'u8[8192]{0}', space=vmem, size = 0x2000, scoped, tag = 'output window, operand 0, single buffered']
    %8 = vsyncpa [#allocation4], 0
    %9 = vsyncpa [#allocation7], 0
    %10 = vsyncpa [#allocation5], 0
    // Predicated region
    $region2: #{tpu_custom_call.1} parent=1 // pred_check
      _
    $region3: #{tpu_custom_call.1} parent=1 // pred_check_branch
      %12 = sbr.rel (0) target = $region5
    $region4: #{tpu_custom_call.1} parent=1 // pred_region
      %s14 = ssub.s32 256, 256
      %15 = vsyncadd [#allocation4], %s14
      %s16 = sshll.u32 [#allocation3], 4
      %s17 = int_to_ptr.vmem [resolvable:$true] %s16
      %22 = dma.hbm_to_vmem [thread:$0]  %s0, 256, %s17, [#allocation4], 128, 128, 8
    $region5: #{tpu_custom_call.1} parent=1 // pred_fallthru
      _
    // Predicated region
    $region6: #{tpu_custom_call.1} parent=1 // pred_check
      _
    $region7: #{tpu_custom_call.1} parent=1 // pred_check_branch
      %24 = sbr.rel (0) target = $region9
    $region8: #{tpu_custom_call.1} parent=1 // pred_region
      %s26 = ssub.s32 512, 512
      %27 = vsyncadd [#allocation7], %s26
      %s28 = sshll.u32 [#allocation6], 4
      %s29 = int_to_ptr.vmem [resolvable:$true] %s28
      %34 = dma.hbm_to_vmem [thread:$0]  %s1, 512, %s29, [#allocation7], 128, 128, 8
    $region9: #{tpu_custom_call.1} parent=1 // pred_fallthru
      _
    // Predicated region
    $region10: #{tpu_custom_call.1} parent=1 // pred_check
      _
    $region11: #{tpu_custom_call.1} parent=1 // pred_check_branch
      %36 = sbr.rel (0) target = $region13
    $region12: #{tpu_custom_call.1} parent=1 // pred_region
      _
    $region13: #{tpu_custom_call.1} parent=1 // pred_fallthru
      _
    // Predicated region
    $region14: #{tpu_custom_call.1} parent=1 // pred_check
      _
    $region15: #{tpu_custom_call.1} parent=1 // pred_check_branch
      %38 = sbr.rel (0) target = $region17
    $region16: #{tpu_custom_call.1} parent=1 // pred_region
      %39 = dma.done [#allocation4], 256
    $region17: #{tpu_custom_call.1} parent=1 // pred_fallthru
      _
    // Predicated region
    $region18: #{tpu_custom_call.1} parent=1 // pred_check
      _
    $region19: #{tpu_custom_call.1} parent=1 // pred_check_branch
      %41 = sbr.rel (0) target = $region21
    $region20: #{tpu_custom_call.1} parent=1 // pred_region
      %42 = dma.done [#allocation7], 512
    $region21: #{tpu_custom_call.1} parent=1 // pred_fallthru
      _
    %p43 = scmp.eq.s32.totalorder 0, 0
    // Predicated region
    $region22: #{tpu_custom_call.1} parent=1 // pred_check
      %p44 = pneg %p43
    $region23: #{tpu_custom_call.1} parent=1 // pred_check_branch
      %46 = sbr.rel (%p44) target = $region25
    $region24: #{tpu_custom_call.1} parent=1 // pred_region
      %vm47 = vcmask 261120
      %48 = vst.msk [vmem:[#allocation2] sm:$0xff] %vm47, 0.0
      %49 = vst.msk [vmem:[#allocation2 + $0x8] sm:$0xff] %vm47, 0.0
    $region25: #{tpu_custom_call.1} parent=1 // pred_fallthru
      _
    %v50 = vld [vmem:[#allocation2] sm:$0xff]
    %v51 = vld [vmem:[#allocation2 + $0x8] sm:$0xff]
    %v52 = vld [vmem:[#allocation3] sm:$0xff]
    %v53 = vld [vmem:[#allocation3 + $0x8] sm:$0xff]
    %v54 = vld [vmem:[#allocation6] sm:$0xff]
    %v55 = vld [vmem:[#allocation6 + $0x8] sm:$0xff]
    %v56 = vld [vmem:[#allocation6 + $0x10] sm:$0xff]
    %v57 = vld [vmem:[#allocation6 + $0x18] sm:$0xff]
    %vm58 = vcmask 261120
    %v60 = vsel %vm58, %v52, 0
    %v63 = vsel %vm58, %v53, 0
    %65 = vmatprep.subr.mxu0 0.0
    %66 = vmatpush1.msra.mxu0 %v54
    %67 = vmatprep.subr.mxu0 0.0
    %68 = vmatpush1.msra.mxu0 %v55
    %69 = vmatprep.subr.mxu0 0.0
    %70 = vmatpush1.msra.mxu0 %v56
    %71 = vmatprep.subr.mxu0 0.0
    %72 = vmatpush1.msra.mxu0 %v57
    %73 = vmatprep.subr.mxu0 0.0
    %74 = vmatpush1.msra.mxu0 0.0
    %75 = vmatprep.subr.mxu0 0.0
    %76 = vmatpush1.msra.mxu0 0.0
    %77 = vmatprep.subr.mxu0 0.0
    %78 = vmatpush1.msra.mxu0 0.0
    %79 = vmatprep.subr.mxu0 0.0
    %80 = vmatpush1.msra.mxu0 0.0
    %81 = vmatprep.subr.mxu0 0.0
    %82 = vmatpush1.msra.mxu0 0.0
    %83 = vmatprep.subr.mxu0 0.0
    %84 = vmatpush1.msra.mxu0 0.0
    %85 = vmatprep.subr.mxu0 0.0
    %86 = vmatpush1.msra.mxu0 0.0
    %87 = vmatprep.subr.mxu0 0.0
    %88 = vmatpush1.msra.mxu0 0.0
    %89 = vmatprep.subr.mxu0 0.0
    %90 = vmatpush1.msra.mxu0 0.0
    %91 = vmatprep.subr.mxu0 0.0
    %92 = vmatpush1.msra.mxu0 0.0
    %93 = vmatprep.subr.mxu0 0.0
    %94 = vmatpush1.msra.mxu0 0.0
    %95 = vmatprep.subr.mxu0 0.0
    %96 = vmatpush1.msra.mxu0 0.0
    %97 = vmatprep.subr.mxu0 0.0
    %98 = vmatpush1.msra.mxu0 0.0
    %99 = vmatprep.subr.mxu0 0.0
    %100 = vmatpush1.msra.mxu0 0.0
    %101 = vmatprep.subr.mxu0 0.0
    %102 = vmatpush1.msra.mxu0 0.0
    %103 = vmatprep.subr.mxu0 0.0
    %104 = vmatpush1.msra.mxu0 0.0
    %105 = vmatprep.subr.mxu0 0.0
    %106 = vmatpush1.msra.mxu0 0.0
    %107 = vmatprep.subr.mxu0 0.0
    %108 = vmatpush1.msra.mxu0 0.0
    %109 = vmatprep.subr.mxu0 0.0
    %110 = vmatpush1.msra.mxu0 0.0
    %111 = vmatprep.subr.mxu0 0.0
    %112 = vmatpush1.msra.mxu0 0.0
    %113 = vmatprep.subr.mxu0 0.0
    %114 = vmatpush1.msra.mxu0 0.0
    %115 = vmatprep.subr.mxu0 0.0
    %116 = vmatpush1.msra.mxu0 0.0
    %117 = vmatprep.subr.mxu0 0.0
    %118 = vmatpush1.msra.mxu0 0.0
    %119 = vmatprep.subr.mxu0 0.0
    %120 = vmatpush1.msra.mxu0 0.0
    %121 = vmatprep.subr.mxu0 0.0
    %122 = vmatpush1.msra.mxu0 0.0
    %123 = vmatprep.subr.mxu0 0.0
    %124 = vmatpush1.msra.mxu0 0.0
    %125 = vmatprep.subr.mxu0 0.0
    %126 = vmatpush1.msra.mxu0 0.0
    %127 = vmatprep.subr.mxu0 0.0
    %128 = vmatpush1.msra.mxu0 0.0
    %129 = vmatprep.mubr.f32.mxu0 0.0
    %130 = vmatmul.mubr.f32.gmra.mrb[0].mxu0 %v60
    %v131 = vpop.f32.mrb[0].mxu0
    %v132 = vadd.f32 0.0, %v131
    %v133 = vpop.f32.mrb[0].mxu0
    %134 = vmatprep.mubr.f32.mxu0 0.0
    %135 = vmatmul.mubr.f32.gmra.mrb[0].mxu0 %v63
    %v136 = vpop.f32.mrb[0].mxu0
    %v137 = vadd.f32 0.0, %v136
    %v138 = vpop.f32.mrb[0].mxu0
    %139 = vdwg.mxu0
    %v140 = vadd.f32 %v50, %v132
    %v141 = vadd.f32 %v51, %v137
    %142 = vst.msk [vmem:[#allocation2] sm:$0xff] %vm58, %v140
    %143 = vst.msk [vmem:[#allocation2 + $0x8] sm:$0xff] %vm58, %v141
    // Predicated region
    $region26: #{tpu_custom_call.1} parent=1 // pred_check
      %p144 = pneg %p43
    $region27: #{tpu_custom_call.1} parent=1 // pred_check_branch
      %146 = sbr.rel (%p144) target = $region29
    $region28: #{tpu_custom_call.1} parent=1 // pred_region
      %v147 = vld [vmem:[#allocation2] sm:$0xff]
      %v148 = vld [vmem:[#allocation2 + $0x8] sm:$0xff]
      %v149 = vld [vmem:[%s2] sm:$0x1]
      %v151 = vlaneseq
      %v152 = vshrl.u32 %v151, 7
      %v153 = vsub.s32 0, %v152
      %v154 = vrot.slane %v149, %v153
      %v156 = vadd.f32 %v147, %v154
      %v157 = vadd.f32 %v148, %v154
      %158 = vst.msk [vmem:[#allocation8] sm:$0xff] %vm58, %v156
      %159 = vst.msk [vmem:[#allocation8 + $0x8] sm:$0xff] %vm58, %v157
    $region29: #{tpu_custom_call.1} parent=1 // pred_fallthru
      _
    // Predicated region
    $region30: #{tpu_custom_call.1} parent=1 // pred_check
      _
    $region31: #{tpu_custom_call.1} parent=1 // pred_check_branch
      %161 = sbr.rel (0) target = $region33
    $region32: #{tpu_custom_call.1} parent=1 // pred_region
      %s163 = ssub.s32 256, 256
      %164 = vsyncadd [#allocation5], %s163
      %s165 = sshll.u32 [#allocation8], 4
      %s166 = int_to_ptr.vmem [resolvable:$true] %s165
      %171 = dma.vmem_to_hbm [thread:$0]  %s166, 256, %s3, [#allocation5], 128, 128, 8
    $region33: #{tpu_custom_call.1} parent=1 // pred_fallthru
      _
    // Predicated region
    $region34: #{tpu_custom_call.1} parent=1 // pred_check
      _
    $region35: #{tpu_custom_call.1} parent=1 // pred_check_branch
      %173 = sbr.rel (0) target = $region37
    $region36: #{tpu_custom_call.1} parent=1 // pred_region
      %174 = dma.done [#allocation5], 256
    $region37: #{tpu_custom_call.1} parent=1 // pred_fallthru
      _
    %175 = vsyncpa [#allocation4], 1
    %176 = vsyncpa [#allocation7], 1
    %177 = vsyncpa [#allocation5], 1

</llo_original>
